<compile_context>
chip_gen: v6e
topology: v6e:2x2x1
jax: 0.10.0
libtpu: 0.0.40
codegen_flags: <defaults>
</compile_context>

<pallas_src>
import math
import functools

import jax
import jax.numpy as jnp
from jax.experimental import pallas as pl
from jax.experimental.pallas import tpu as pltpu

_LANES = 128


def _parabola_kernel(u_ref, o_ref, *, a, b):
    """Elementwise lane-dense tile: o = a * (1 - sigmoid(u))**b, 0 -> 1e-8."""
    u = u_ref[...].astype(jnp.float32)           # (tile_m, 128)
    vis = jax.nn.sigmoid(u)                      # faithful to torch.sigmoid
    r = 1.0 - vis                                # r == 0 iff sigmoid saturated
    # In f32, r is either exactly 0 or >= 2**-24, so this clamp never alters a
    # live value; it only keeps log() off -inf on the masked-out r == 0 lanes.
    safe_r = jnp.maximum(r, jnp.float32(1e-30))
    powed = jnp.float32(a) * jnp.exp(jnp.float32(b) * jnp.log(safe_r))
    # Reference checks (a * r**b) == 0 AFTER the power; for r > 0 the power
    # (b ~= 0.3) can never underflow to 0, so masking on r == 0 is equivalent.
    o_ref[...] = jnp.where(r > 0.0, powed, jnp.float32(1e-8))


def _round_up(x, m):
    return (x + m - 1) // m * m


def _parabola_jax(u_flat, a, b):
    """Pure-JAX path for tiny N (kernel launch overhead would dominate)."""
    vis = jax.nn.sigmoid(u_flat.astype(jnp.float32))
    powed = jnp.float32(a) * jnp.power(1.0 - vis, jnp.float32(b))
    out = jnp.where(powed == 0.0, jnp.float32(1e-8), powed)
    return jnp.broadcast_to(out[:, None], (u_flat.shape[0], 2))


def cotracker_parabola_func_mapping(uncert, *, thre=0.1, up=2,
                                    block_rows=512, min_pallas_n=4096):
    """Pallas TPU implementation of CotrackerParabolaFuncMapping.forward."""
    if uncert.ndim == 2:
        assert uncert.shape[1] == 1, "expected uncert of shape (N, 1)"
    else:
        assert uncert.ndim == 1, "expected uncert of shape (N, 1) or (N,)"
    n = uncert.shape[0]
    a = float(up)
    b = math.log(1.0 / up) / math.log(thre)      # == math.log(1/up, thre)

    u_flat = uncert.reshape(n)                   # keep native dtype

    if n < min_pallas_n:
        return _parabola_jax(u_flat, a, b)

    # Lane-dense slab: (M, 128), M rounded up to a whole number of tiles.
    m = pl.cdiv(n, _LANES)
    tile_m = min(block_rows, _round_up(m, 16))   # 16-row multiple (f32 & bf16 safe)
    m_pad = _round_up(m, tile_m)
    total = m_pad * _LANES

    pad = total - n
    if pad:
        u_flat = jnp.pad(u_flat, (0, pad))       # pad value 0 is harmless (sliced off)
    slab = u_flat.reshape(m_pad, _LANES)

    kernel = functools.partial(_parabola_kernel, a=a, b=b)
    itemsize = jnp.dtype(slab.dtype).itemsize

    out_slab = pl.pallas_call(
        kernel,
        out_shape=jax.ShapeDtypeStruct((m_pad, _LANES), jnp.float32),
        grid=(m_pad // tile_m,),
        in_specs=[pl.BlockSpec((tile_m, _LANES), lambda i: (i, 0))],
        out_specs=pl.BlockSpec((tile_m, _LANES), lambda i: (i, 0)),
        compiler_params=pltpu.CompilerParams(
            dimension_semantics=("parallel",)),
        cost_estimate=pl.CostEstimate(
            flops=5 * total,
            transcendentals=4 * total,
            bytes_accessed=(itemsize + 4) * total),
    )(slab)

    out_flat = out_slab.reshape(-1)[:n]
    # The (N, 2) column duplication is a trivial broadcast done OUTSIDE the
    # kernel so the kernel output stays lane-dense (unmasked 128-wide stores).
    return jnp.broadcast_to(out_flat[:, None], (n, 2))


def _reference(uncert, *, thre=0.1, up=2):
    """Pure-JAX transcription of the PyTorch forward."""
    a = float(up)
    b = math.log(1.0 / up) / math.log(thre)
    vis = jax.nn.sigmoid(uncert.astype(jnp.float32).reshape(-1, 1))
    r = jnp.broadcast_to(1.0 - vis, (uncert.shape[0], 2))
    r = a * jnp.power(r, jnp.float32(b))
    return jnp.where(r == 0.0, r + 1e-8, r)


if __name__ == "__main__":
    key = jax.random.PRNGKey(0)

    # --- Pallas path: N not a multiple of 128 (exercises padding / slicing),
    # forced past the tiny-N fallback; includes saturated-sigmoid extremes.
    n = 300
    uncert = jax.random.normal(key, (n, 1), dtype=jnp.float32) * 4.0
    uncert = uncert.at[0, 0].set(30.0)    # sigmoid -> 1, r -> 0  => 1e-8 branch
    uncert = uncert.at[1, 0].set(-30.0)   # sigmoid -> 0, r -> 1  => output a

    out = cotracker_parabola_func_mapping(uncert, min_pallas_n=0)
    out = jax.block_until_ready(out)
    ref = _reference(uncert)
    assert out.shape == (n, 2)
    assert jnp.allclose(out, ref, rtol=1e-5, atol=1e-7), (out, ref)

    # --- Tiny-N path: default threshold routes to the pure-JAX fallback.
    n2 = 8
    uncert2 = jax.random.normal(jax.random.PRNGKey(1), (n2, 1), dtype=jnp.float32)
    out2 = jax.block_until_ready(cotracker_parabola_func_mapping(uncert2))
    ref2 = _reference(uncert2)
    assert out2.shape == (n2, 2)
    assert jnp.allclose(out2, ref2, rtol=1e-5, atol=1e-7), (out2, ref2)

    print("KERNEL_OK")
</pallas_src>

<mosaic_0001>
module attributes {stable_mosaic.version = 11 : i64} {
  func.func @_parabola_kernel(%arg0: i32, %arg1: memref<16x128xf32, #tpu.memory_space<vmem>>, %arg2: memref<16x128xf32, #tpu.memory_space<vmem>>) attributes {dimension_semantics = [#tpu.dimension_semantics<parallel>], iteration_bounds = array<i64: 1>, scalar_prefetch = 0 : i64, scratch_operands = 0 : i64, tpu.core_type = #tpu.core_type<tc>, window_params = [{transform_indices = @transform_0, window_bounds = array<i64: 16, 128>}, {transform_indices = @transform_1, window_bounds = array<i64: 16, 128>}]} {
    %c0 = arith.constant 0 : index
    %c0_0 = arith.constant 0 : index
    %0 = vector.load %arg1[%c0, %c0_0] : memref<16x128xf32, #tpu.memory_space<vmem>>, vector<16x128xf32>
    %1 = arith.negf %0 : vector<16x128xf32>
    %2 = math.exp %1 : vector<16x128xf32>
    %cst = arith.constant 1.000000e+00 : f32
    %3 = vector.broadcast %cst : f32 to vector<16x128xf32>
    %4 = arith.addf %3, %2 : vector<16x128xf32>
    %5 = arith.divf %3, %4 : vector<16x128xf32>
    %cst_1 = arith.constant 1.000000e+00 : f32
    %6 = vector.broadcast %cst_1 : f32 to vector<16x128xf32>
    %7 = arith.subf %6, %5 : vector<16x128xf32>
    %cst_2 = arith.constant 1.000000e-30 : f32
    %8 = vector.broadcast %cst_2 : f32 to vector<16x128xf32>
    %9 = arith.maximumf %7, %8 : vector<16x128xf32>
    %10 = math.log %9 : vector<16x128xf32>
    %cst_3 = arith.constant 3.010300e-01 : f32
    %11 = vector.broadcast %cst_3 : f32 to vector<16x128xf32>
    %12 = arith.mulf %11, %10 : vector<16x128xf32>
    %13 = math.exp %12 : vector<16x128xf32>
    %cst_4 = arith.constant 2.000000e+00 : f32
    %14 = vector.broadcast %cst_4 : f32 to vector<16x128xf32>
    %15 = arith.mulf %14, %13 : vector<16x128xf32>
    %cst_5 = arith.constant 0.000000e+00 : f32
    %16 = vector.broadcast %cst_5 : f32 to vector<16x128xf32>
    %17 = arith.cmpf ogt, %7, %16 : vector<16x128xf32>
    %cst_6 = arith.constant 9.99999993E-9 : f32
    %18 = vector.broadcast %cst_6 : f32 to vector<16x128xf32>
    %19 = arith.select %17, %15, %18 : vector<16x128xi1>, vector<16x128xf32>
    %c0_7 = arith.constant 0 : index
    %c0_8 = arith.constant 0 : index
    %20 = vector.load %arg2[%c0_7, %c0_8] : memref<16x128xf32, #tpu.memory_space<vmem>>, vector<16x128xf32>
    tpu.vector_store %arg2[%c0_7, %c0_8], %19 {strides = array<i32>} : memref<16x128xf32, #tpu.memory_space<vmem>>, vector<16x128xf32>,
    return
  }
  func.func @transform_0(%arg0: i32) -> (i32, i32) {
    %c0_i32 = arith.constant 0 : i32
    %c0_i32_0 = arith.constant 0 : i32
    return %arg0, %c0_i32 : i32, i32
  }
  func.func @transform_1(%arg0: i32) -> (i32, i32) {
    %c0_i32 = arith.constant 0 : i32
    %c0_i32_0 = arith.constant 0 : i32
    return %arg0, %c0_i32 : i32, i32
  }
}

</mosaic_0001>

<llo_original>
// kernel: tpu_custom_call.1
$region0: #{tpu_custom_call.1}
  #allocation0 [shape = 'u32[]', space=smem, size = 0x4, offset = 0x4, fixed_abs, tag = 'smem constant byte address 0x4 - core index']
  #allocation1 [shape = 'u32[144,128]{1,0:T(1,128)}', space=vmem, size = 0x12000, scoped, tag = 'internal scratch']
  %s0 = inlined_call_operand.hbm [shape: f32[16,128], index: 0, kind: input, shape index: {}]
  %s1 = inlined_call_operand.hbm [shape: f32[16,128], index: 1, kind: output, shape index: {}]
  %s2 = sld [smem:[#allocation0]]
  $region18: #{tpu_custom_call.1} parent=0
    _
  %s4 = ssub.s32 1, %s2
  %s5 = scalar_select 0, %s4, %s2
  $region1: #{tpu_custom_call.1} parent=0
    #allocation2 [shape = 'u8[8192]{0}', space=vmem, size = 0x2000, scoped, tag = 'input window, operand 0, single buffered']
    #allocation3 [shape = 's32[1]{0}', space=sflag, size = 0x4, scoped, tag = 'scoped memory for tpu_custom_call.1']
    #allocation4 [shape = 's32[1]{0}', space=sflag, size = 0x4, scoped, tag = 'scoped memory for tpu_custom_call.1']
    #allocation5 [shape = 'u8[8192]{0}', space=vmem, size = 0x2000, scoped, tag = 'output window, operand 0, single buffered']
    %6 = vsyncpa [#allocation3], 0
    %7 = vsyncpa [#allocation4], 0
    // Predicated region
    $region2: #{tpu_custom_call.1} parent=1 // pred_check
      _
    $region3: #{tpu_custom_call.1} parent=1 // pred_check_branch
      %9 = sbr.rel (0) target = $region5
    $region4: #{tpu_custom_call.1} parent=1 // pred_region
      %s11 = ssub.s32 256, 256
      %12 = vsyncadd [#allocation3], %s11
      %s13 = sshll.u32 [#allocation2], 4
      %s14 = int_to_ptr.vmem [resolvable:$true] %s13
      %19 = dma.hbm_to_vmem [thread:$0]  %s0, 256, %s14, [#allocation3], 128, 128, 8
    $region5: #{tpu_custom_call.1} parent=1 // pred_fallthru
      _
    // Predicated region
    $region6: #{tpu_custom_call.1} parent=1 // pred_check
      _
    $region7: #{tpu_custom_call.1} parent=1 // pred_check_branch
      %21 = sbr.rel (0) target = $region9
    $region8: #{tpu_custom_call.1} parent=1 // pred_region
      %22 = dma.done [#allocation3], 256
    $region9: #{tpu_custom_call.1} parent=1 // pred_fallthru
      _
    %v23 = vld [vmem:[#allocation2] sm:$0xff]
    %v24 = vld [vmem:[#allocation2 + $0x8] sm:$0xff]
    %v25 = vxor.u32 %v23, 2147483648
    %v26 = vxor.u32 %v24, 2147483648
    %v27 = vmul.f32 %v25, 1.442695
    %v28 = vpow.pop %v27
    %v29 = vmul.f32 %v26, 1.442695
    %v30 = vpow.pop %v29
    %v31 = vadd.f32 %v28, 1.0
    %v32 = vadd.f32 %v30, 1.0
    %v33 = vrcp.pop %v31
    %v34 = vmul.f32 1.0, %v33
    %v35 = vrcp.pop %v32
    %v36 = vmul.f32 1.0, %v35
    %v37 = vsub.f32 1.0, %v34
    %v38 = vsub.f32 1.0, %v36
    %v39 = vmax.f32 %v37, 1e-30
    %v40 = vmax.f32 %v38, 1e-30
    %v41 = vlog2.pop %v39
    %v42 = vmul.f32 %v41, 0.6931472
    %v43 = vlog2.pop %v40
    %v44 = vmul.f32 %v43, 0.6931472
    %v45 = vmul.f32 %v42, 0.30103
    %v46 = vmul.f32 %v44, 0.30103
    %v47 = vmul.f32 %v45, 1.442695
    %v48 = vpow.pop %v47
    %v49 = vmul.f32 %v46, 1.442695
    %v50 = vpow.pop %v49
    %v51 = vmul.f32 %v48, 2.0
    %v52 = vmul.f32 %v50, 2.0
    %vm53 = vcmp.gt.f32.partialorder %v37, 0.0
    %vm54 = vcmp.gt.f32.partialorder %v38, 0.0
    %v55 = vsel %vm53, %v51, 1e-08
    %v56 = vsel %vm54, %v52, 1e-08
    %57 = vst [vmem:[#allocation5] sm:$0xff] %v55
    %58 = vst [vmem:[#allocation5 + $0x8] sm:$0xff] %v56
    // Predicated region
    $region10: #{tpu_custom_call.1} parent=1 // pred_check
      _
    $region11: #{tpu_custom_call.1} parent=1 // pred_check_branch
      %60 = sbr.rel (0) target = $region13
    $region12: #{tpu_custom_call.1} parent=1 // pred_region
      %s62 = ssub.s32 256, 256
      %63 = vsyncadd [#allocation4], %s62
      %s64 = sshll.u32 [#allocation5], 4
      %s65 = int_to_ptr.vmem [resolvable:$true] %s64
      %70 = dma.vmem_to_hbm [thread:$0]  %s65, 256, %s1, [#allocation4], 128, 128, 8
    $region13: #{tpu_custom_call.1} parent=1 // pred_fallthru
      _
    // Predicated region
    $region14: #{tpu_custom_call.1} parent=1 // pred_check
      _
    $region15: #{tpu_custom_call.1} parent=1 // pred_check_branch
      %72 = sbr.rel (0) target = $region17
    $region16: #{tpu_custom_call.1} parent=1 // pred_region
      %73 = dma.done [#allocation4], 256
    $region17: #{tpu_custom_call.1} parent=1 // pred_fallthru
      _
    %74 = vsyncpa [#allocation3], 1
    %75 = vsyncpa [#allocation4], 1

</llo_original>
